<compile_context>
chip_gen: v6e
topology: v6e:2x2x1
jax: 0.10.0
libtpu: 0.0.40
codegen_flags: <defaults>
</compile_context>

<pallas_src>
import functools
import math

import jax
import jax.numpy as jnp
import numpy as np
from jax import lax
from jax.experimental import pallas as pl
from jax.experimental.pallas import tpu as pltpu

# ---------------- config (small, consistent with the module) ----------------
BATCH = 2
SEQ = 8
HIDDEN = 32
NUM_HEADS = 4
HEAD_DIM = HIDDEN // NUM_HEADS
MLP_DIM = 64
LN_EPS = 1e-6


# ------------------------------- kernel -------------------------------------
def _layernorm(x, gamma, beta):
    # E[x^2] - mean^2 form: the two cross-lane reductions are independent, so
    # they can issue back-to-back on the XLU instead of serializing
    # reduce(mean) -> sub -> square -> reduce(var).
    mean = jnp.mean(x, axis=-1, keepdims=True)
    mean_sq = jnp.mean(x * x, axis=-1, keepdims=True)
    var = jnp.maximum(mean_sq - mean * mean, 0.0)
    return (x - mean) * lax.rsqrt(var + LN_EPS) * gamma + beta


def _gelu_exact(x):
    # torch.nn.functional.gelu default = exact erf-based GELU
    return 0.5 * x * (1.0 + lax.erf(x * 0.7071067811865476))


def block_kernel(
    x_ref,
    ln1_g_ref, ln1_b_ref,
    wqkv_ref, bqkv_ref, wo_ref, bo_ref,
    ln2_g_ref, ln2_b_ref,
    w1_ref, b1_ref, w2_ref, b2_ref,
    head_mask_ref, batch_mask_ref,
    out_ref,
    *, batch, seq, num_heads, head_dim,
):
    BS = batch * seq                  # flattened (batch, token) rows
    H = num_heads * head_dim          # hidden size
    HH = num_heads * BS               # score columns: (head, key-position)

    x = x_ref[...]                                    # (BS, H)

    # --- attention_norm ---
    xn = _layernorm(x, ln1_g_ref[...], ln1_b_ref[...])

    # --- fused Q/K/V projection: one (BS,H) x (H,3H) MXU matmul ---
    qkv = jnp.dot(xn, wqkv_ref[...], preferred_element_type=jnp.float32) + bqkv_ref[...]
    q = qkv[:, :H]                    # 1/sqrt(head_dim) already folded into Wq/bq
    k = qkv[:, H:2 * H]
    v = qkv[:, 2 * H:]

    # --- block-diagonal multi-head attention over flattened rows ---
    # head_mask (constant, hoisted): head_mask[c, e] = 1 iff score column c
    # (= head*BS + key_row) and hidden index e belong to the same head.
    head_mask = head_mask_ref[...]                               # (HH, H)

    # Head-tiled, head-masked K / V: row c holds key/value row (c % BS) with
    # only head (c // BS)'s lanes kept.  One broadcast + layout-preserving
    # reshape (BS is sublane-aligned) instead of a num_heads-way concatenate.
    k_m = jnp.broadcast_to(k[None], (num_heads, BS, H)).reshape(HH, H) * head_mask
    v_m = jnp.broadcast_to(v[None], (num_heads, BS, H)).reshape(HH, H) * head_mask

    # scores[i, c] = sum_e q[i, e] * k_m[c, e]  == per-head q . k^T (NT matmul)
    # (Mosaic handles the RHS transpose on the XLU; tile is tiny -> modest.)
    scores = lax.dot_general(
        q, k_m, (((1,), (1,)), ((), ())), preferred_element_type=jnp.float32
    )                                                            # (BS, HH)

    # Cross-batch additive mask (constant, hoisted): 0 for same-batch
    # key positions, -1e30 otherwise.
    scores = scores + batch_mask_ref[...]

    # Softmax (per head / per batch block).  A single global row-max is a valid
    # shift constant; masked entries underflow to exactly 0.
    scores = scores - jnp.max(scores, axis=-1, keepdims=True)
    p = jnp.exp(scores)                                          # (BS, HH)

    # Fused PV + denominator: one (BS,HH) x (HH,2H) matmul whose RHS is
    # [masked V | head_mask]; lanes [0,H) give the unnormalized context and
    # lanes [H,2H) give the per-head softmax denominator.
    pv_rhs = jnp.concatenate([v_m, head_mask], axis=-1)          # (HH, 2H)
    pv = jnp.dot(p, pv_rhs, preferred_element_type=jnp.float32)  # (BS, 2H)
    # Exact division kept for numerical parity; denom clamped so a fully
    # underflowed head can never yield 0/0 = NaN.
    ctx = pv[:, :H] / jnp.maximum(pv[:, H:], jnp.float32(1e-30))

    attn_out = jnp.dot(ctx, wo_ref[...], preferred_element_type=jnp.float32) + bo_ref[...]
    # attn_dropout / proj_dropout: identity (eval mode)

    x1 = attn_out + x

    # --- ffn_norm + Mlp ---
    xn2 = _layernorm(x1, ln2_g_ref[...], ln2_b_ref[...])
    f = jnp.dot(xn2, w1_ref[...], preferred_element_type=jnp.float32) + b1_ref[...]
    f = _gelu_exact(f)
    f2 = jnp.dot(f, w2_ref[...], preferred_element_type=jnp.float32) + b2_ref[...]
    # dropout: identity (eval mode)

    out_ref[...] = f2 + x1


# ------------------------------- wrapper -------------------------------------
def fuse_params(p):
    """One-time parameter transform: fuse Q/K/V and fold in the 1/sqrt(d) scale."""
    scale = 1.0 / math.sqrt(HEAD_DIM)
    return {
        "ln1_g": p["ln1_g"], "ln1_b": p["ln1_b"],
        "wqkv": jnp.concatenate([p["wq"] * scale, p["wk"], p["wv"]], axis=1),
        "bqkv": jnp.concatenate([p["bq"] * scale, p["bk"], p["bv"]], axis=1),
        "wo": p["wo"], "bo": p["bo"],
        "ln2_g": p["ln2_g"], "ln2_b": p["ln2_b"],
        "w1": p["w1"], "b1": p["b1"], "w2": p["w2"], "b2": p["b2"],
    }


def _make_masks(batch, seq, num_heads, head_dim):
    """Grid-invariant compile-time constants, built host-side with numpy."""
    BS = batch * seq
    H = num_heads * head_dim
    HH = num_heads * BS
    c = np.arange(HH)
    e = np.arange(H)
    # head_mask[c, e] = 1 iff column c's head == hidden index e's head
    head_mask = ((c[:, None] // BS) == (e[None, :] // head_dim)).astype(np.float32)
    # batch_mask[i, c] = 0 if query row i and key column c are in the same
    # batch element, else -1e30 (additive)
    qi = np.arange(BS)
    same_batch = (qi[:, None] // seq) == ((c[None, :] % BS) // seq)
    batch_mask = np.where(same_batch, 0.0, -1e30).astype(np.float32)
    return head_mask, batch_mask


@jax.jit
def block_forward(x, fused):
    """x: (B, S, H); fused: output of fuse_params.  Returns (out, None)."""
    B, S, H = x.shape
    x2 = x.reshape(B * S, H)          # free wrapper-side flatten -> single grid step

    head_mask, batch_mask = _make_masks(B, S, NUM_HEADS, H // NUM_HEADS)

    kernel = functools.partial(
        block_kernel, batch=B, seq=S,
        num_heads=NUM_HEADS, head_dim=H // NUM_HEADS,
    )

    order = ("ln1_g", "ln1_b", "wqkv", "bqkv", "wo", "bo",
             "ln2_g", "ln2_b", "w1", "b1", "w2", "b2")
    plist = [fused[n] for n in order]

    vmem_spec = pl.BlockSpec(memory_space=pltpu.MemorySpace.VMEM)
    out2 = pl.pallas_call(
        kernel,
        out_shape=jax.ShapeDtypeStruct((B * S, H), jnp.float32),
        in_specs=[vmem_spec] * (1 + len(plist) + 2),
        out_specs=vmem_spec,
    )(x2, *plist, jnp.asarray(head_mask), jnp.asarray(batch_mask))

    return out2.reshape(B, S, H), None   # vis=False -> weights is None


# ------------------------- deterministic params ------------------------------
def make_params(key):
    ks = jax.random.split(key, 8)

    def xavier(k, shape):
        fan_in, fan_out = shape
        bound = math.sqrt(6.0 / (fan_in + fan_out))
        return jax.random.uniform(k, shape, jnp.float32, -bound, bound)

    H, M = HIDDEN, MLP_DIM
    return {
        "ln1_g": jnp.ones((1, H), jnp.float32),
        "ln1_b": jnp.zeros((1, H), jnp.float32),
        "wq": xavier(ks[0], (H, H)), "bq": jnp.zeros((1, H), jnp.float32),
        "wk": xavier(ks[1], (H, H)), "bk": jnp.zeros((1, H), jnp.float32),
        "wv": xavier(ks[2], (H, H)), "bv": jnp.zeros((1, H), jnp.float32),
        "wo": xavier(ks[3], (H, H)), "bo": jnp.zeros((1, H), jnp.float32),
        "ln2_g": jnp.ones((1, H), jnp.float32),
        "ln2_b": jnp.zeros((1, H), jnp.float32),
        "w1": xavier(ks[4], (H, M)),
        "b1": 1e-6 * jax.random.normal(ks[5], (1, M), jnp.float32),
        "w2": xavier(ks[6], (M, H)),
        "b2": 1e-6 * jax.random.normal(ks[7], (1, H), jnp.float32),
    }


# --------------------------- pure-JAX reference -------------------------------
def block_reference(x, p):
    def ln(v, g, b):
        mu = jnp.mean(v, axis=-1, keepdims=True)
        var = jnp.mean((v - mu) ** 2, axis=-1, keepdims=True)
        return (v - mu) / jnp.sqrt(var + LN_EPS) * g + b

    B, S, H = x.shape
    h = x
    xn = ln(x, p["ln1_g"], p["ln1_b"])
    q = xn @ p["wq"] + p["bq"]
    k = xn @ p["wk"] + p["bk"]
    v = xn @ p["wv"] + p["bv"]
    q = q.reshape(B, S, NUM_HEADS, HEAD_DIM).transpose(0, 2, 1, 3)
    k = k.reshape(B, S, NUM_HEADS, HEAD_DIM).transpose(0, 2, 1, 3)
    v = v.reshape(B, S, NUM_HEADS, HEAD_DIM).transpose(0, 2, 1, 3)
    s = jnp.einsum("bhqd,bhkd->bhqk", q, k) / math.sqrt(HEAD_DIM)
    pr = jax.nn.softmax(s, axis=-1)
    ctx = jnp.einsum("bhqk,bhkd->bhqd", pr, v).transpose(0, 2, 1, 3).reshape(B, S, H)
    attn_out = ctx @ p["wo"] + p["bo"]
    x1 = attn_out + h
    h2 = x1
    xn2 = ln(x1, p["ln2_g"], p["ln2_b"])
    f = jax.nn.gelu(xn2 @ p["w1"] + p["b1"], approximate=False)
    f2 = f @ p["w2"] + p["b2"]
    return f2 + h2


# ----------------------------------- main -------------------------------------
if __name__ == "__main__":
    key = jax.random.PRNGKey(0)
    kx, kp = jax.random.split(key)
    x = jax.random.normal(kx, (BATCH, SEQ, HIDDEN), jnp.float32)
    params = make_params(kp)
    fused = fuse_params(params)          # one-time weight fusion / scale folding

    out, weights = block_forward(x, fused)
    out = jax.block_until_ready(out)

    ref = block_reference(x, params)
    np.testing.assert_allclose(np.asarray(out), np.asarray(ref), rtol=2e-5, atol=2e-5)

    print("KERNEL_OK")
</pallas_src>

<mosaic_0001>
module attributes {stable_mosaic.version = 11 : i64} {
  func.func @block_kernel(%arg0: memref<16x32xf32, #tpu.memory_space<vmem>>, %arg1: memref<1x32xf32, #tpu.memory_space<vmem>>, %arg2: memref<1x32xf32, #tpu.memory_space<vmem>>, %arg3: memref<32x96xf32, #tpu.memory_space<vmem>>, %arg4: memref<1x96xf32, #tpu.memory_space<vmem>>, %arg5: memref<32x32xf32, #tpu.memory_space<vmem>>, %arg6: memref<1x32xf32, #tpu.memory_space<vmem>>, %arg7: memref<1x32xf32, #tpu.memory_space<vmem>>, %arg8: memref<1x32xf32, #tpu.memory_space<vmem>>, %arg9: memref<32x64xf32, #tpu.memory_space<vmem>>, %arg10: memref<1x64xf32, #tpu.memory_space<vmem>>, %arg11: memref<64x32xf32, #tpu.memory_space<vmem>>, %arg12: memref<1x32xf32, #tpu.memory_space<vmem>>, %arg13: memref<64x32xf32, #tpu.memory_space<vmem>>, %arg14: memref<16x64xf32, #tpu.memory_space<vmem>>, %arg15: memref<16x32xf32, #tpu.memory_space<vmem>>) attributes {dimension_semantics = [], scalar_prefetch = 0 : i64, scratch_operands = 0 : i64, tpu.core_type = #tpu.core_type<tc>} {
    %c0 = arith.constant 0 : index
    %c0_0 = arith.constant 0 : index
    %0 = vector.load %arg0[%c0, %c0_0] : memref<16x32xf32, #tpu.memory_space<vmem>>, vector<16x32xf32>
    %c0_1 = arith.constant 0 : index
    %c0_2 = arith.constant 0 : index
    %1 = vector.load %arg1[%c0_1, %c0_2] : memref<1x32xf32, #tpu.memory_space<vmem>>, vector<1x32xf32>
    %c0_3 = arith.constant 0 : index
    %c0_4 = arith.constant 0 : index
    %2 = vector.load %arg2[%c0_3, %c0_4] : memref<1x32xf32, #tpu.memory_space<vmem>>, vector<1x32xf32>
    %cst = arith.constant dense<0.000000e+00> : vector<16xf32>
    %3 = vector.multi_reduction <add>, %0, %cst [1] : vector<16x32xf32> to vector<16xf32>
    %4 = vector.shape_cast %3 : vector<16xf32> to vector<16x1xf32>
    %cst_5 = arith.constant 3.200000e+01 : f32
    %5 = vector.broadcast %cst_5 : f32 to vector<16x1xf32>
    %6 = arith.divf %4, %5 : vector<16x1xf32>
    %7 = arith.mulf %0, %0 : vector<16x32xf32>
    %cst_6 = arith.constant dense<0.000000e+00> : vector<16xf32>
    %8 = vector.multi_reduction <add>, %7, %cst_6 [1] : vector<16x32xf32> to vector<16xf32>
    %9 = vector.shape_cast %8 : vector<16xf32> to vector<16x1xf32>
    %cst_7 = arith.constant 3.200000e+01 : f32
    %10 = vector.broadcast %cst_7 : f32 to vector<16x1xf32>
    %11 = arith.divf %9, %10 : vector<16x1xf32>
    %12 = arith.mulf %6, %6 : vector<16x1xf32>
    %13 = arith.subf %11, %12 : vector<16x1xf32>
    %cst_8 = arith.constant 0.000000e+00 : f32
    %14 = vector.broadcast %cst_8 : f32 to vector<16x1xf32>
    %15 = arith.maximumf %13, %14 : vector<16x1xf32>
    %16 = vector.broadcast %6 : vector<16x1xf32> to vector<16x32xf32>
    %17 = arith.subf %0, %16 : vector<16x32xf32>
    %cst_9 = arith.constant 9.99999997E-7 : f32
    %18 = vector.broadcast %cst_9 : f32 to vector<16x1xf32>
    %19 = arith.addf %15, %18 : vector<16x1xf32>
    %20 = math.rsqrt %19 : vector<16x1xf32>
    %21 = vector.broadcast %20 : vector<16x1xf32> to vector<16x32xf32>
    %22 = arith.mulf %17, %21 : vector<16x32xf32>
    %23 = vector.broadcast %1 : vector<1x32xf32> to vector<16x32xf32>
    %24 = arith.mulf %22, %23 : vector<16x32xf32>
    %25 = vector.broadcast %2 : vector<1x32xf32> to vector<16x32xf32>
    %26 = arith.addf %24, %25 : vector<16x32xf32>
    %c0_10 = arith.constant 0 : index
    %c0_11 = arith.constant 0 : index
    %27 = vector.load %arg3[%c0_10, %c0_11] : memref<32x96xf32, #tpu.memory_space<vmem>>, vector<32x96xf32>
    %cst_12 = arith.constant dense<0.000000e+00> : vector<16x96xf32>
    %28 = tpu.matmul %26, %27, %cst_12 {dimension_numbers = #tpu.dot_dimension_numbers<[1], [0], [0], [1], [0, 0, 1, 1], [], []>} : vector<16x32xf32>, vector<32x96xf32>, vector<16x96xf32> -> vector<16x96xf32>
    %c0_13 = arith.constant 0 : index
    %c0_14 = arith.constant 0 : index
    %29 = vector.load %arg4[%c0_13, %c0_14] : memref<1x96xf32, #tpu.memory_space<vmem>>, vector<1x96xf32>
    %30 = vector.broadcast %29 : vector<1x96xf32> to vector<16x96xf32>
    %31 = arith.addf %28, %30 : vector<16x96xf32>
    %32 = vector.extract_strided_slice %31 {offsets = [0, 0], sizes = [16, 32], strides = [1, 1]} : vector<16x96xf32> to vector<16x32xf32>
    %33 = vector.extract_strided_slice %31 {offsets = [0, 32], sizes = [16, 32], strides = [1, 1]} : vector<16x96xf32> to vector<16x32xf32>
    %34 = vector.extract_strided_slice %31 {offsets = [0, 64], sizes = [16, 32], strides = [1, 1]} : vector<16x96xf32> to vector<16x32xf32>
    %c0_15 = arith.constant 0 : index
    %c0_16 = arith.constant 0 : index
    %35 = vector.load %arg13[%c0_15, %c0_16] : memref<64x32xf32, #tpu.memory_space<vmem>>, vector<64x32xf32>
    %36 = vector.shape_cast %33 : vector<16x32xf32> to vector<1x16x32xf32>
    %37 = vector.shape_cast %36 : vector<1x16x32xf32> to vector<1x16x32xf32>
    %38 = vector.broadcast %37 : vector<1x16x32xf32> to vector<4x16x32xf32>
    %39 = vector.shape_cast %38 : vector<4x16x32xf32> to vector<64x32xf32>
    %40 = arith.mulf %39, %35 : vector<64x32xf32>
    %41 = vector.shape_cast %34 : vector<16x32xf32> to vector<1x16x32xf32>
    %42 = vector.shape_cast %41 : vector<1x16x32xf32> to vector<1x16x32xf32>
    %43 = vector.broadcast %42 : vector<1x16x32xf32> to vector<4x16x32xf32>
    %44 = vector.shape_cast %43 : vector<4x16x32xf32> to vector<64x32xf32>
    %45 = arith.mulf %44, %35 : vector<64x32xf32>
    %cst_17 = arith.constant dense<0.000000e+00> : vector<16x64xf32>
    %46 = tpu.matmul %32, %40, %cst_17 {dimension_numbers = #tpu.dot_dimension_numbers<[1], [1], [0], [0], [0, 0, 1, 0], [], []>} : vector<16x32xf32>, vector<64x32xf32>, vector<16x64xf32> -> vector<16x64xf32>
    %c0_18 = arith.constant 0 : index
    %c0_19 = arith.constant 0 : index
    %47 = vector.load %arg14[%c0_18, %c0_19] : memref<16x64xf32, #tpu.memory_space<vmem>>, vector<16x64xf32>
    %48 = arith.addf %46, %47 : vector<16x64xf32>
    %cst_20 = arith.constant dense<0xFF800000> : vector<16xf32>
    %49 = vector.multi_reduction <maximumf>, %48, %cst_20 [1] : vector<16x64xf32> to vector<16xf32>
    %50 = vector.shape_cast %49 : vector<16xf32> to vector<16x1xf32>
    %51 = vector.broadcast %50 : vector<16x1xf32> to vector<16x64xf32>
    %52 = arith.subf %48, %51 : vector<16x64xf32>
    %53 = math.exp %52 : vector<16x64xf32>
    %54 = tpu.concatenate %45, %35 in 1 : vector<64x32xf32>, vector<64x32xf32> -> vector<64x64xf32>
    %cst_21 = arith.constant dense<0.000000e+00> : vector<16x64xf32>
    %55 = tpu.matmul %53, %54, %cst_21 {dimension_numbers = #tpu.dot_dimension_numbers<[1], [0], [0], [1], [0, 0, 1, 1], [], []>} : vector<16x64xf32>, vector<64x64xf32>, vector<16x64xf32> -> vector<16x64xf32>
    %56 = vector.extract_strided_slice %55 {offsets = [0, 0], sizes = [16, 32], strides = [1, 1]} : vector<16x64xf32> to vector<16x32xf32>
    %57 = vector.extract_strided_slice %55 {offsets = [0, 32], sizes = [16, 32], strides = [1, 1]} : vector<16x64xf32> to vector<16x32xf32>
    %cst_22 = arith.constant 1.000000e-30 : f32
    %58 = vector.broadcast %cst_22 : f32 to vector<16x32xf32>
    %59 = arith.maximumf %57, %58 : vector<16x32xf32>
    %60 = arith.divf %56, %59 : vector<16x32xf32>
    %c0_23 = arith.constant 0 : index
    %c0_24 = arith.constant 0 : index
    %61 = vector.load %arg5[%c0_23, %c0_24] : memref<32x32xf32, #tpu.memory_space<vmem>>, vector<32x32xf32>
    %cst_25 = arith.constant dense<0.000000e+00> : vector<16x32xf32>
    %62 = tpu.matmul %60, %61, %cst_25 {dimension_numbers = #tpu.dot_dimension_numbers<[1], [0], [0], [1], [0, 0, 1, 1], [], []>} : vector<16x32xf32>, vector<32x32xf32>, vector<16x32xf32> -> vector<16x32xf32>
    %c0_26 = arith.constant 0 : index
    %c0_27 = arith.constant 0 : index
    %63 = vector.load %arg6[%c0_26, %c0_27] : memref<1x32xf32, #tpu.memory_space<vmem>>, vector<1x32xf32>
    %64 = vector.broadcast %63 : vector<1x32xf32> to vector<16x32xf32>
    %65 = arith.addf %62, %64 : vector<16x32xf32>
    %66 = arith.addf %65, %0 : vector<16x32xf32>
    %c0_28 = arith.constant 0 : index
    %c0_29 = arith.constant 0 : index
    %67 = vector.load %arg7[%c0_28, %c0_29] : memref<1x32xf32, #tpu.memory_space<vmem>>, vector<1x32xf32>
    %c0_30 = arith.constant 0 : index
    %c0_31 = arith.constant 0 : index
    %68 = vector.load %arg8[%c0_30, %c0_31] : memref<1x32xf32, #tpu.memory_space<vmem>>, vector<1x32xf32>
    %cst_32 = arith.constant dense<0.000000e+00> : vector<16xf32>
    %69 = vector.multi_reduction <add>, %66, %cst_32 [1] : vector<16x32xf32> to vector<16xf32>
    %70 = vector.shape_cast %69 : vector<16xf32> to vector<16x1xf32>
    %cst_33 = arith.constant 3.200000e+01 : f32
    %71 = vector.broadcast %cst_33 : f32 to vector<16x1xf32>
    %72 = arith.divf %70, %71 : vector<16x1xf32>
    %73 = arith.mulf %66, %66 : vector<16x32xf32>
    %cst_34 = arith.constant dense<0.000000e+00> : vector<16xf32>
    %74 = vector.multi_reduction <add>, %73, %cst_34 [1] : vector<16x32xf32> to vector<16xf32>
    %75 = vector.shape_cast %74 : vector<16xf32> to vector<16x1xf32>
    %cst_35 = arith.constant 3.200000e+01 : f32
    %76 = vector.broadcast %cst_35 : f32 to vector<16x1xf32>
    %77 = arith.divf %75, %76 : vector<16x1xf32>
    %78 = arith.mulf %72, %72 : vector<16x1xf32>
    %79 = arith.subf %77, %78 : vector<16x1xf32>
    %cst_36 = arith.constant 0.000000e+00 : f32
    %80 = vector.broadcast %cst_36 : f32 to vector<16x1xf32>
    %81 = arith.maximumf %79, %80 : vector<16x1xf32>
    %82 = vector.broadcast %72 : vector<16x1xf32> to vector<16x32xf32>
    %83 = arith.subf %66, %82 : vector<16x32xf32>
    %cst_37 = arith.constant 9.99999997E-7 : f32
    %84 = vector.broadcast %cst_37 : f32 to vector<16x1xf32>
    %85 = arith.addf %81, %84 : vector<16x1xf32>
    %86 = math.rsqrt %85 : vector<16x1xf32>
    %87 = vector.broadcast %86 : vector<16x1xf32> to vector<16x32xf32>
    %88 = arith.mulf %83, %87 : vector<16x32xf32>
    %89 = vector.broadcast %67 : vector<1x32xf32> to vector<16x32xf32>
    %90 = arith.mulf %88, %89 : vector<16x32xf32>
    %91 = vector.broadcast %68 : vector<1x32xf32> to vector<16x32xf32>
    %92 = arith.addf %90, %91 : vector<16x32xf32>
    %c0_38 = arith.constant 0 : index
    %c0_39 = arith.constant 0 : index
    %93 = vector.load %arg9[%c0_38, %c0_39] : memref<32x64xf32, #tpu.memory_space<vmem>>, vector<32x64xf32>
    %cst_40 = arith.constant dense<0.000000e+00> : vector<16x64xf32>
    %94 = tpu.matmul %92, %93, %cst_40 {dimension_numbers = #tpu.dot_dimension_numbers<[1], [0], [0], [1], [0, 0, 1, 1], [], []>} : vector<16x32xf32>, vector<32x64xf32>, vector<16x64xf32> -> vector<16x64xf32>
    %c0_41 = arith.constant 0 : index
    %c0_42 = arith.constant 0 : index
    %95 = vector.load %arg10[%c0_41, %c0_42] : memref<1x64xf32, #tpu.memory_space<vmem>>, vector<1x64xf32>
    %96 = vector.broadcast %95 : vector<1x64xf32> to vector<16x64xf32>
    %97 = arith.addf %94, %96 : vector<16x64xf32>
    %cst_43 = arith.constant 5.000000e-01 : f32
    %98 = vector.broadcast %cst_43 : f32 to vector<16x64xf32>
    %99 = arith.mulf %98, %97 : vector<16x64xf32>
    %cst_44 = arith.constant 0.707106769 : f32
    %100 = vector.broadcast %cst_44 : f32 to vector<16x64xf32>
    %101 = arith.mulf %97, %100 : vector<16x64xf32>
    %102 = math.erf %101 : vector<16x64xf32>
    %cst_45 = arith.constant 1.000000e+00 : f32
    %103 = vector.broadcast %cst_45 : f32 to vector<16x64xf32>
    %104 = arith.addf %103, %102 : vector<16x64xf32>
    %105 = arith.mulf %99, %104 : vector<16x64xf32>
    %c0_46 = arith.constant 0 : index
    %c0_47 = arith.constant 0 : index
    %106 = vector.load %arg11[%c0_46, %c0_47] : memref<64x32xf32, #tpu.memory_space<vmem>>, vector<64x32xf32>
    %cst_48 = arith.constant dense<0.000000e+00> : vector<16x32xf32>
    %107 = tpu.matmul %105, %106, %cst_48 {dimension_numbers = #tpu.dot_dimension_numbers<[1], [0], [0], [1], [0, 0, 1, 1], [], []>} : vector<16x64xf32>, vector<64x32xf32>, vector<16x32xf32> -> vector<16x32xf32>
    %c0_49 = arith.constant 0 : index
    %c0_50 = arith.constant 0 : index
    %108 = vector.load %arg12[%c0_49, %c0_50] : memref<1x32xf32, #tpu.memory_space<vmem>>, vector<1x32xf32>
    %109 = vector.broadcast %108 : vector<1x32xf32> to vector<16x32xf32>
    %110 = arith.addf %107, %109 : vector<16x32xf32>
    %111 = arith.addf %110, %66 : vector<16x32xf32>
    %c0_51 = arith.constant 0 : index
    %c0_52 = arith.constant 0 : index
    %112 = vector.load %arg15[%c0_51, %c0_52] : memref<16x32xf32, #tpu.memory_space<vmem>>, vector<16x32xf32>
    tpu.vector_store %arg15[%c0_51, %c0_52], %111 {strides = array<i32>} : memref<16x32xf32, #tpu.memory_space<vmem>>, vector<16x32xf32>,
    return
  }
}

</mosaic_0001>

<llo_original>
// kernel: block_forward.1
$region0: #{block_forward.1}
  #allocation0 [shape = 'u32[]', space=smem, size = 0x4, offset = 0x4, fixed_abs, tag = 'smem constant byte address 0x4 - core index']
  #allocation1 [shape = 'u32[144,128]{1,0:T(1,128)}', space=vmem, size = 0x12000, scoped, tag = 'internal scratch']
  %s0 = inlined_call_operand.vmem [shape: f32[16,32], index: 0, kind: input, shape index: {}]
  %s1 = inlined_call_operand.vmem [shape: f32[1,32], index: 1, kind: input, shape index: {}]
  %s2 = inlined_call_operand.vmem [shape: f32[1,32], index: 2, kind: input, shape index: {}]
  %s3 = inlined_call_operand.vmem [shape: f32[32,96], index: 3, kind: input, shape index: {}]
  %s4 = inlined_call_operand.vmem [shape: f32[1,96], index: 4, kind: input, shape index: {}]
  %s5 = inlined_call_operand.hbm [shape: f32[32,32], index: 5, kind: input, shape index: {}]
  %s6 = inlined_call_operand.vmem [shape: f32[1,32], index: 6, kind: input, shape index: {}]
  %s7 = inlined_call_operand.vmem [shape: f32[1,32], index: 7, kind: input, shape index: {}]
  %s8 = inlined_call_operand.vmem [shape: f32[1,32], index: 8, kind: input, shape index: {}]
  %s9 = inlined_call_operand.hbm [shape: f32[32,64], index: 9, kind: input, shape index: {}]
  %s10 = inlined_call_operand.vmem [shape: f32[1,64], index: 10, kind: input, shape index: {}]
  %s11 = inlined_call_operand.vmem [shape: f32[64,32], index: 11, kind: input, shape index: {}]
  %s12 = inlined_call_operand.vmem [shape: f32[1,32], index: 12, kind: input, shape index: {}]
  %s13 = inlined_call_operand.vmem [shape: f32[64,32], index: 13, kind: input, shape index: {}]
  %s14 = inlined_call_operand.hbm [shape: f32[16,64], index: 14, kind: input, shape index: {}]
  %s15 = inlined_call_operand.hbm [shape: f32[16,32], index: 15, kind: output, shape index: {}]
  %s16 = sld [smem:[#allocation0]]
  $region82: #{block_forward.1} parent=0
    _
  %s18 = ssub.s32 1, %s16
  %s19 = scalar_select 0, %s18, %s16
  $region1: #{block_forward.1} parent=0
    #allocation2 [shape = 'u8[16384]{0}', space=vmem, size = 0x4000, scoped, tag = 'input window, operand 5, single buffered']
    #allocation3 [shape = 's32[1]{0}', space=sflag, size = 0x4, scoped, tag = 'scoped memory for block_forward.1']
    #allocation4 [shape = 's32[1]{0}', space=sflag, size = 0x4, scoped, tag = 'scoped memory for block_forward.1']
    #allocation5 [shape = 'u8[16384]{0}', space=vmem, size = 0x4000, scoped, tag = 'input window, operand 9, single buffered']
    #allocation6 [shape = 's32[1]{0}', space=sflag, size = 0x4, scoped, tag = 'scoped memory for block_forward.1']
    #allocation7 [shape = 'u8[8192]{0}', space=vmem, size = 0x2000, scoped, tag = 'input window, operand 14, single buffered']
    #allocation8 [shape = 'u8[8192]{0}', space=vmem, size = 0x2000, scoped, tag = 'output window, operand 0, single buffered']
    %20 = vsyncpa [#allocation3], 0
    %21 = vsyncpa [#allocation6], 0
    %22 = vsyncpa [#allocation4], 0
    // Predicated region
    $region2: #{block_forward.1} parent=1 // pred_check
      _
    $region3: #{block_forward.1} parent=1 // pred_check_branch
      %24 = sbr.rel (0) target = $region5
    $region4: #{block_forward.1} parent=1 // pred_region
      _
    $region5: #{block_forward.1} parent=1 // pred_fallthru
      _
    // Predicated region
    $region6: #{block_forward.1} parent=1 // pred_check
      _
    $region7: #{block_forward.1} parent=1 // pred_check_branch
      %26 = sbr.rel (0) target = $region9
    $region8: #{block_forward.1} parent=1 // pred_region
      _
    $region9: #{block_forward.1} parent=1 // pred_fallthru
      _
    // Predicated region
    $region10: #{block_forward.1} parent=1 // pred_check
      _
    $region11: #{block_forward.1} parent=1 // pred_check_branch
      %28 = sbr.rel (0) target = $region13
    $region12: #{block_forward.1} parent=1 // pred_region
      _
    $region13: #{block_forward.1} parent=1 // pred_fallthru
      _
    // Predicated region
    $region14: #{block_forward.1} parent=1 // pred_check
      _
    $region15: #{block_forward.1} parent=1 // pred_check_branch
      %30 = sbr.rel (0) target = $region17
    $region16: #{block_forward.1} parent=1 // pred_region
      _
    $region17: #{block_forward.1} parent=1 // pred_fallthru
      _
    // Predicated region
    $region18: #{block_forward.1} parent=1 // pred_check
      _
    $region19: #{block_forward.1} parent=1 // pred_check_branch
      %32 = sbr.rel (0) target = $region21
    $region20: #{block_forward.1} parent=1 // pred_region
      _
    $region21: #{block_forward.1} parent=1 // pred_fallthru
      _
    // Predicated region
    $region22: #{block_forward.1} parent=1 // pred_check
      _
    $region23: #{block_forward.1} parent=1 // pred_check_branch
      %34 = sbr.rel (0) target = $region25
    $region24: #{block_forward.1} parent=1 // pred_region
      %s36 = ssub.s32 512, 512
      %37 = vsyncadd [#allocation3], %s36
      %s38 = sshll.u32 [#allocation2], 4
      %s39 = int_to_ptr.vmem [resolvable:$true] %s38
      %44 = dma.hbm_to_vmem [thread:$0]  %s5, 512, %s39, [#allocation3], 128, 128, 8
    $region25: #{block_forward.1} parent=1 // pred_fallthru
      _
    // Predicated region
    $region26: #{block_forward.1} parent=1 // pred_check
      _
    $region27: #{block_forward.1} parent=1 // pred_check_branch
      %46 = sbr.rel (0) target = $region29
    $region28: #{block_forward.1} parent=1 // pred_region
      _
    $region29: #{block_forward.1} parent=1 // pred_fallthru
      _
    // Predicated region
    $region30: #{block_forward.1} parent=1 // pred_check
      _
    $region31: #{block_forward.1} parent=1 // pred_check_branch
      %48 = sbr.rel (0) target = $region33
    $region32: #{block_forward.1} parent=1 // pred_region
      _
    $region33: #{block_forward.1} parent=1 // pred_fallthru
      _
    // Predicated region
    $region34: #{block_forward.1} parent=1 // pred_check
      _
    $region35: #{block_forward.1} parent=1 // pred_check_branch
      %50 = sbr.rel (0) target = $region37
    $region36: #{block_forward.1} parent=1 // pred_region
      _
    $region37: #{block_forward.1} parent=1 // pred_fallthru
      _
    // Predicated region
    $region38: #{block_forward.1} parent=1 // pred_check
      _
    $region39: #{block_forward.1} parent=1 // pred_check_branch
      %52 = sbr.rel (0) target = $region41
    $region40: #{block_forward.1} parent=1 // pred_region
      %s54 = ssub.s32 512, 512
      %55 = vsyncadd [#allocation6], %s54
      %s56 = sshll.u32 [#allocation5], 4
      %s57 = int_to_ptr.vmem [resolvable:$true] %s56
      %62 = dma.hbm_to_vmem [thread:$0]  %s9, 512, %s57, [#allocation6], 128, 128, 8
    $region41: #{block_forward.1} parent=1 // pred_fallthru
      _
    // Predicated region
    $region42: #{block_forward.1} parent=1 // pred_check
      _
    $region43: #{block_forward.1} parent=1 // pred_check_branch
      %64 = sbr.rel (0) target = $region45
    $region44: #{block_forward.1} parent=1 // pred_region
      _
    $region45: #{block_forward.1} parent=1 // pred_fallthru
      _
    // Predicated region
    $region46: #{block_forward.1} parent=1 // pred_check
      _
    $region47: #{block_forward.1} parent=1 // pred_check_branch
      %66 = sbr.rel (0) target = $region49
    $region48: #{block_forward.1} parent=1 // pred_region
      _
    $region49: #{block_forward.1} parent=1 // pred_fallthru
      _
    // Predicated region
    $region50: #{block_forward.1} parent=1 // pred_check
      _
    $region51: #{block_forward.1} parent=1 // pred_check_branch
      %68 = sbr.rel (0) target = $region53
    $region52: #{block_forward.1} parent=1 // pred_region
      _
    $region53: #{block_forward.1} parent=1 // pred_fallthru
      _
    // Predicated region
    $region54: #{block_forward.1} parent=1 // pred_check
      _
    $region55: #{block_forward.1} parent=1 // pred_check_branch
      %70 = sbr.rel (0) target = $region57
    $region56: #{block_forward.1} parent=1 // pred_region
      _
    $region57: #{block_forward.1} parent=1 // pred_fallthru
      _
    // Predicated region
    $region58: #{block_forward.1} parent=1 // pred_check
      _
    $region59: #{block_forward.1} parent=1 // pred_check_branch
      %72 = sbr.rel (0) target = $region61
    $region60: #{block_forward.1} parent=1 // pred_region
      %s74 = ssub.s32 256, 256
      %75 = vsyncadd [#allocation6], %s74
      %s76 = sshll.u32 [#allocation7], 4
      %s77 = int_to_ptr.vmem [resolvable:$true] %s76
      %82 = dma.hbm_to_vmem [thread:$0]  %s14, 256, %s77, [#allocation6], 128, 128, 8
    $region61: #{block_forward.1} parent=1 // pred_fallthru
      _
    // Predicated region
    $region62: #{block_forward.1} parent=1 // pred_check
      _
    $region63: #{block_forward.1} parent=1 // pred_check_branch
      %84 = sbr.rel (0) target = $region65
    $region64: #{block_forward.1} parent=1 // pred_region
      %85 = dma.done [#allocation3], 512
    $region65: #{block_forward.1} parent=1 // pred_fallthru
      _
    // Predicated region
    $region66: #{block_forward.1} parent=1 // pred_check
      _
    $region67: #{block_forward.1} parent=1 // pred_check_branch
      %87 = sbr.rel (0) target = $region69
    $region68: #{block_forward.1} parent=1 // pred_region
      %88 = dma.done [#allocation6], 512
    $region69: #{block_forward.1} parent=1 // pred_fallthru
      _
    // Predicated region
    $region70: #{block_forward.1} parent=1 // pred_check
      _
    $region71: #{block_forward.1} parent=1 // pred_check_branch
      %90 = sbr.rel (0) target = $region73
    $region72: #{block_forward.1} parent=1 // pred_region
      %91 = dma.done [#allocation6], 256
    $region73: #{block_forward.1} parent=1 // pred_fallthru
      _
    %v92 = vld [vmem:[%s0] sm:$0xff]
    %v93 = vld [vmem:[%s0 + $0x8] sm:$0xff]
    %v94 = vld [vmem:[%s1] sm:$0x1]
    %v95 = vld [vmem:[%s2] sm:$0x1]
    %vm96 = vcmask 261120
    %v97 = vsel %vm96, %v92, 0.0
    %98 = vadd.xlane.f32.xlu0 %v97
    %v99 = vpop.xlane.xlu0 %98
    %v100 = vsel %vm96, %v93, 0.0
    %101 = vadd.xlane.f32.xlu0 %v100
    %v102 = vpop.xlane.xlu0 %101
    %v103 = vrcp.pop 32.0
    %v104 = vmul.f32 %v99, %v103
    %v105 = vmul.f32 %v102, %v103
    %v106 = vmul.f32 %v92, %v92
    %v107 = vmul.f32 %v93, %v93
    %v108 = vsel %vm96, %v106, 0.0
    %109 = vadd.xlane.f32.xlu0 %v108
    %v110 = vpop.xlane.xlu0 %109
    %v111 = vsel %vm96, %v107, 0.0
    %112 = vadd.xlane.f32.xlu0 %v111
    %v113 = vpop.xlane.xlu0 %112
    %v114 = vmul.f32 %v110, %v103
    %v115 = vmul.f32 %v113, %v103
    %v116 = vmul.f32 %v104, %v104
    %v117 = vmul.f32 %v105, %v105
    %v118 = vsub.f32 %v114, %v116
    %v119 = vsub.f32 %v115, %v117
    %v120 = vmax.f32 %v118, 0.0
    %v121 = vmax.f32 %v119, 0.0
    %v122 = vsub.f32 %v92, %v104
    %v123 = vsub.f32 %v93, %v105
    %v124 = vadd.f32 %v120, 1e-06
    %v125 = vadd.f32 %v121, 1e-06
    %v126 = vrsqrt.pop %v124
    %v127 = vrsqrt.pop %v125
    %v128 = vmul.f32 %v122, %v126
    %v129 = vmul.f32 %v123, %v127
    %v131 = vlaneseq
    %v132 = vshrl.u32 %v131, 7
    %v133 = vsub.s32 0, %v132
    %v134 = vrot.slane %v94, %v133
    %v136 = vmul.f32 %v128, %v134
    %v137 = vmul.f32 %v129, %v134
    %v139 = vlaneseq
    %v140 = vshrl.u32 %v139, 7
    %v141 = vsub.s32 0, %v140
    %v142 = vrot.slane %v95, %v141
    %v144 = vadd.f32 %v136, %v142
    %v145 = vadd.f32 %v137, %v142
    %v146 = vld [vmem:[%s3] sm:$0xff]
    %v147 = vld [vmem:[%s3 + $0x8] sm:$0xff]
    %v148 = vld [vmem:[%s3 + $0x10] sm:$0xff]
    %v149 = vld [vmem:[%s3 + $0x18] sm:$0xff]
    %v150 = vld [vmem:[%s4] sm:$0x1]
    %v152 = vlaneseq
    %v153 = vshrl.u32 %v152, 7
    %v154 = vsub.s32 0, %v153
    %v155 = vrot.slane %v150, %v154
    %v158 = vsel %vm96, %v144, 0
    %v161 = vsel %vm96, %v145, 0
    %163 = vmatprep.subr.mxu0 0.0
    %164 = vmatpush1.msra.mxu0 0.0
    %165 = vmatprep.subr.mxu0 0.0
    %166 = vmatpush1.msra.mxu0 0.0
    %167 = vmatprep.subr.mxu0 0.0
    %168 = vmatpush1.msra.mxu0 0.0
    %169 = vmatprep.subr.mxu0 0.0
    %170 = vmatpush1.msra.mxu0 0.0
    %171 = vmatprep.subr.mxu0 0.0
    %172 = vmatpush1.msra.mxu0 0.0
    %173 = vmatprep.subr.mxu0 0.0
    %174 = vmatpush1.msra.mxu0 0.0
    %175 = vmatprep.subr.mxu0 0.0
    %176 = vmatpush1.msra.mxu0 0.0
    %177 = vmatprep.subr.mxu0 0.0
    %178 = vmatpush1.msra.mxu0 0.0
    %179 = vmatprep.subr.mxu0 0.0
    %180 = vmatpush1.msra.mxu0 0.0
    %181 = vmatprep.subr.mxu0 0.0
    %182 = vmatpush1.msra.mxu0 0.0
    %183 = vmatprep.subr.mxu0 0.0
    %184 = vmatpush1.msra.mxu0 0.0
    %185 = vmatprep.subr.mxu0 0.0
    %186 = vmatpush1.msra.mxu0 0.0
    %187 = vmatprep.subr.mxu0 0.0
    %188 = vmatpush1.msra.mxu0 %v149
    %189 = vmatprep.subr.mxu0 0.0
    %190 = vmatpush1.msra.mxu0 %v148
    %191 = vmatprep.subr.mxu0 0.0
    %192 = vmatpush1.msra.mxu0 %v147
    %193 = vmatprep.subr.mxu0 0.0
    %194 = vmatpush1.msra.mxu0 %v146
    %195 = vmatprep.subr.mxu0 0.0
    %196 = vmatpush2.msra.mxu0 0.0
    %197 = vmatprep.subr.mxu0 0.0
    %198 = vmatpush2.msra.mxu0 0.0
    %199 = vmatprep.subr.mxu0 0.0
    %200 = vmatpush2.msra.mxu0 0.0
    %201 = vmatprep.subr.mxu0 0.0
    %202 = vmatpush2.msra.mxu0 0.0
    %203 = vmatprep.subr.mxu0 0.0
    %204 = vmatpush2.msra.mxu0 0.0
    %205 = vmatprep.subr.mxu0 0.0
    %206 = vmatpush2.msra.mxu0 0.0
    %207 = vmatprep.subr.mxu0 0.0
    %208 = vmatpush2.msra.mxu0 0.0
    %209 = vmatprep.subr.mxu0 0.0
    %210 = vmatpush2.msra.mxu0 0.0
    %211 = vmatprep.subr.mxu0 0.0
    %212 = vmatpush2.msra.mxu0 0.0
    %213 = vmatprep.subr.mxu0 0.0
    %214 = vmatpush2.msra.mxu0 0.0
    %215 = vmatprep.subr.mxu0 0.0
    %216 = vmatpush2.msra.mxu0 0.0
    %217 = vmatprep.subr.mxu0 0.0
    %218 = vmatpush2.msra.mxu0 0.0
    %219 = vmatprep.subr.mxu0 0.0
    %220 = vmatpush2.msra.mxu0 0.0
    %221 = vmatprep.subr.mxu0 0.0
    %222 = vmatpush2.msra.mxu0 0.0
    %223 = vmatprep.subr.mxu0 0.0
    %224 = vmatpush2.msra.mxu0 0.0
    %225 = vmatprep.subr.mxu0 0.0
    %226 = vmatpush2.msra.mxu0 0.0
    %227 = vmatprep.mubr.f32.mxu0 0.0
    %228 = vmatmul.mubr.f32.gmra.mxu0 %v158
    %v229 = vpop.f32.mrf.mxu0
    %v230 = vadd.f32 %v155, %v229
    %v231 = vpop.f32.mrf.mxu0
    %232 = vmatprep.mubr.f32.mxu0 0.0
    %233 = vmatmul.mubr.f32.gmra.mxu0 %v161
    %v234 = vpop.f32.mrf.mxu0
    %v235 = vadd.f32 %v155, %v234
    %v236 = vpop.f32.mrf.mxu0
    %237 = vdwg.mxu0
    %v238 = vld [vmem:[%s13] sm:$0xff]
    %v239 = vld [vmem:[%s13 + $0x8] sm:$0xff]
    %v240 = vld [vmem:[%s13 + $0x10] sm:$0xff]
    %v241 = vld [vmem:[%s13 + $0x18] sm:$0xff]
    %v242 = vld [vmem:[%s13 + $0x20] sm:$0xff]
    %v243 = vld [vmem:[%s13 + $0x28] sm:$0xff]
    %v244 = vld [vmem:[%s13 + $0x30] sm:$0xff]
    %v245 = vld [vmem:[%s13 + $0x38] sm:$0xff]
    %254 = vrot.lane.b32.xlu0 %v238, 32
    %v255 = vpop.permute.xlu0 %254
    %256 = vrot.lane.b32.xlu0 %v239, 32
    %v257 = vpop.permute.xlu0 %256
    %258 = vrot.lane.b32.xlu0 %v240, 32
    %v259 = vpop.permute.xlu0 %258
    %260 = vrot.lane.b32.xlu0 %v241, 32
    %v261 = vpop.permute.xlu0 %260
    %262 = vrot.lane.b32.xlu0 %v242, 32
    %v263 = vpop.permute.xlu0 %262
    %264 = vrot.lane.b32.xlu0 %v243, 32
    %v265 = vpop.permute.xlu0 %264
    %266 = vrot.lane.b32.xlu0 %v244, 32
    %v267 = vpop.permute.xlu0 %266
    %268 = vrot.lane.b32.xlu0 %v245, 32
    %v269 = vpop.permute.xlu0 %268
    %v278 = vmul.f32 %v230, %v255
    %v279 = vmul.f32 %v235, %v257
    %v280 = vmul.f32 %v230, %v259
    %v281 = vmul.f32 %v235, %v261
    %v282 = vmul.f32 %v230, %v263
    %v283 = vmul.f32 %v235, %v265
    %v284 = vmul.f32 %v230, %v267
    %v285 = vmul.f32 %v235, %v269
    %286 = vrot.lane.b32.xlu0 %v238, 64
    %v287 = vpop.permute.xlu0 %286
    %288 = vrot.lane.b32.xlu0 %v239, 64
    %v289 = vpop.permute.xlu0 %288
    %290 = vrot.lane.b32.xlu0 %v240, 64
    %v291 = vpop.permute.xlu0 %290
    %292 = vrot.lane.b32.xlu0 %v241, 64
    %v293 = vpop.permute.xlu0 %292
    %294 = vrot.lane.b32.xlu0 %v242, 64
    %v295 = vpop.permute.xlu0 %294
    %296 = vrot.lane.b32.xlu0 %v243, 64
    %v297 = vpop.permute.xlu0 %296
    %298 = vrot.lane.b32.xlu0 %v244, 64
    %v299 = vpop.permute.xlu0 %298
    %300 = vrot.lane.b32.xlu0 %v245, 64
    %v301 = vpop.permute.xlu0 %300
    %v310 = vmul.f32 %v230, %v287
    %v311 = vmul.f32 %v235, %v289
    %v312 = vmul.f32 %v230, %v291
    %v313 = vmul.f32 %v235, %v293
    %v314 = vmul.f32 %v230, %v295
    %v315 = vmul.f32 %v235, %v297
    %v316 = vmul.f32 %v230, %v299
    %v317 = vmul.f32 %v235, %v301
    %v318 = vld [vmem:[#allocation7] sm:$0xff]
    %v319 = vld [vmem:[#allocation7 + $0x8] sm:$0xff]
    %328 = vrot.lane.b32.xlu0 %v278, 96
    %v329 = vpop.permute.xlu0 %328
    %330 = vrot.lane.b32.xlu0 %v279, 96
    %v331 = vpop.permute.xlu0 %330
    %332 = vrot.lane.b32.xlu0 %v280, 96
    %v333 = vpop.permute.xlu0 %332
    %334 = vrot.lane.b32.xlu0 %v281, 96
    %v335 = vpop.permute.xlu0 %334
    %336 = vrot.lane.b32.xlu0 %v282, 96
    %v337 = vpop.permute.xlu0 %336
    %338 = vrot.lane.b32.xlu0 %v283, 96
    %v339 = vpop.permute.xlu0 %338
    %340 = vrot.lane.b32.xlu0 %v284, 96
    %v341 = vpop.permute.xlu0 %340
    %342 = vrot.lane.b32.xlu0 %v285, 96
    %v343 = vpop.permute.xlu0 %342
    %v345 = vsel %vm96, %v230, 0
    %v348 = vsel %vm96, %v235, 0
    %v350 = vsel %vm96, %v329, 0
    %v352 = vsel %vm96, %v331, 0
    %v354 = vsel %vm96, %v333, 0
    %v356 = vsel %vm96, %v335, 0
    %v358 = vsel %vm96, %v337, 0
    %v360 = vsel %vm96, %v339, 0
    %v362 = vsel %vm96, %v341, 0
    %v364 = vsel %vm96, %v343, 0
    %366 = vmatprep.subr.mxu0 0.0
    %367 = vmatpush1.xpose.msra.mxu0 0.0
    %368 = vmatprep.subr.mxu0 0.0
    %369 = vmatpush1.xpose.msra.mxu0 0.0
    %370 = vmatprep.subr.mxu0 0.0
    %371 = vmatpush1.xpose.msra.mxu0 0.0
    %372 = vmatprep.subr.mxu0 0.0
    %373 = vmatpush1.xpose.msra.mxu0 0.0
    %374 = vmatprep.subr.mxu0 0.0
    %375 = vmatpush1.xpose.msra.mxu0 0.0
    %376 = vmatprep.subr.mxu0 0.0
    %377 = vmatpush1.xpose.msra.mxu0 0.0
    %378 = vmatprep.subr.mxu0 0.0
    %379 = vmatpush1.xpose.msra.mxu0 0.0
    %380 = vmatprep.subr.mxu0 0.0
    %381 = vmatpush1.xpose.msra.mxu0 0.0
    %382 = vmatprep.subr.mxu0 0.0
    %383 = vmatpush1.xpose.msra.mxu0 %v364
    %384 = vmatprep.subr.mxu0 0.0
    %385 = vmatpush1.xpose.msra.mxu0 %v362
    %386 = vmatprep.subr.mxu0 0.0
    %387 = vmatpush1.xpose.msra.mxu0 %v360
    %388 = vmatprep.subr.mxu0 0.0
    %389 = vmatpush1.xpose.msra.mxu0 %v358
    %390 = vmatprep.subr.mxu0 0.0
    %391 = vmatpush1.xpose.msra.mxu0 %v356
    %392 = vmatprep.subr.mxu0 0.0
    %393 = vmatpush1.xpose.msra.mxu0 %v354
    %394 = vmatprep.subr.mxu0 0.0
    %395 = vmatpush1.xpose.msra.mxu0 %v352
    %396 = vmatprep.subr.mxu0 0.0
    %397 = vmatpush1.xpose.msra.mxu0 %v350
    %398 = vmatprep.subr.mxu0 0.0
    %399 = vmatpush2.xpose.msra.mxu0 0.0
    %400 = vmatprep.subr.mxu0 0.0
    %401 = vmatpush2.xpose.msra.mxu0 0.0
    %402 = vmatprep.subr.mxu0 0.0
    %403 = vmatpush2.xpose.msra.mxu0 0.0
    %404 = vmatprep.subr.mxu0 0.0
    %405 = vmatpush2.xpose.msra.mxu0 0.0
    %406 = vmatprep.subr.mxu0 0.0
    %407 = vmatpush2.xpose.msra.mxu0 0.0
    %408 = vmatprep.subr.mxu0 0.0
    %409 = vmatpush2.xpose.msra.mxu0 0.0
    %410 = vmatprep.subr.mxu0 0.0
    %411 = vmatpush2.xpose.msra.mxu0 0.0
    %412 = vmatprep.subr.mxu0 0.0
    %413 = vmatpush2.xpose.msra.mxu0 0.0
    %414 = vmatprep.subr.mxu0 0.0
    %415 = vmatpush2.xpose.msra.mxu0 0.0
    %416 = vmatprep.subr.mxu0 0.0
    %417 = vmatpush2.xpose.msra.mxu0 0.0
    %418 = vmatprep.subr.mxu0 0.0
    %419 = vmatpush2.xpose.msra.mxu0 0.0
    %420 = vmatprep.subr.mxu0 0.0
    %421 = vmatpush2.xpose.msra.mxu0 0.0
    %422 = vmatprep.subr.mxu0 0.0
    %423 = vmatpush2.xpose.msra.mxu0 0.0
    %424 = vmatprep.subr.mxu0 0.0
    %425 = vmatpush2.xpose.msra.mxu0 0.0
    %426 = vmatprep.subr.mxu0 0.0
    %427 = vmatpush2.xpose.msra.mxu0 0.0
    %428 = vmatprep.subr.mxu0 0.0
    %429 = vmatpush2.xpose.msra.mxu0 0.0
    %430 = vmatprep.mubr.f32.mxu0 0.0
    %431 = vmatmul.mubr.f32.gmra.mxu0 %v345
    %v432 = vpop.f32.mrf.mxu0
    %v433 = vadd.f32 %v318, %v432
    %v434 = vpop.f32.mrf.mxu0
    %435 = vmatprep.mubr.f32.mxu0 0.0
    %436 = vmatmul.mubr.f32.gmra.mxu0 %v348
    %v437 = vpop.f32.mrf.mxu0
    %v438 = vadd.f32 %v319, %v437
    %v439 = vpop.f32.mrf.mxu0
    %440 = vdwg.mxu0
    %vm441 = vcmask 523264
    %v442 = vsel %vm441, %v433, -inf
    %443 = vmax.xlane.f32.xlu0 %v442
    %v444 = vpop.xlane.xlu0 %443
    %v445 = vsel %vm441, %v438, -inf
    %446 = vmax.xlane.f32.xlu0 %v445
    %v447 = vpop.xlane.xlu0 %446
    %v448 = vsub.f32 %v433, %v444
    %v449 = vsub.f32 %v438, %v447
    %v450 = vmul.f32 %v448, 1.442695
    %v451 = vpow.pop %v450
    %v452 = vmul.f32 %v449, 1.442695
    %v453 = vpow.pop %v452
    %462 = vrot.lane.b32.xlu0 %v310, 64
    %v463 = vpop.permute.xlu0 %462
    %464 = vrot.lane.b32.xlu0 %v311, 64
    %v465 = vpop.permute.xlu0 %464
    %466 = vrot.lane.b32.xlu0 %v312, 64
    %v467 = vpop.permute.xlu0 %466
    %468 = vrot.lane.b32.xlu0 %v313, 64
    %v469 = vpop.permute.xlu0 %468
    %470 = vrot.lane.b32.xlu0 %v314, 64
    %v471 = vpop.permute.xlu0 %470
    %472 = vrot.lane.b32.xlu0 %v315, 64
    %v473 = vpop.permute.xlu0 %472
    %474 = vrot.lane.b32.xlu0 %v316, 64
    %v475 = vpop.permute.xlu0 %474
    %476 = vrot.lane.b32.xlu0 %v317, 64
    %v477 = vpop.permute.xlu0 %476
    %v486 = vsel %vm96, %v463, %v255
    %v487 = vsel %vm96, %v465, %v257
    %v488 = vsel %vm96, %v467, %v259
    %v489 = vsel %vm96, %v469, %v261
    %v490 = vsel %vm96, %v471, %v263
    %v491 = vsel %vm96, %v473, %v265
    %v492 = vsel %vm96, %v475, %v267
    %v493 = vsel %vm96, %v477, %v269
    %v495 = vsel %vm441, %v451, 0
    %v498 = vsel %vm441, %v453, 0
    %500 = vmatprep.subr.mxu0 0.0
    %501 = vmatpush1.msra.mxu0 0.0
    %502 = vmatprep.subr.mxu0 0.0
    %503 = vmatpush1.msra.mxu0 0.0
    %504 = vmatprep.subr.mxu0 0.0
    %505 = vmatpush1.msra.mxu0 0.0
    %506 = vmatprep.subr.mxu0 0.0
    %507 = vmatpush1.msra.mxu0 0.0
    %508 = vmatprep.subr.mxu0 0.0
    %509 = vmatpush1.msra.mxu0 0.0
    %510 = vmatprep.subr.mxu0 0.0
    %511 = vmatpush1.msra.mxu0 0.0
    %512 = vmatprep.subr.mxu0 0.0
    %513 = vmatpush1.msra.mxu0 0.0
    %514 = vmatprep.subr.mxu0 0.0
    %515 = vmatpush1.msra.mxu0 0.0
    %516 = vmatprep.subr.mxu0 0.0
    %517 = vmatpush1.msra.mxu0 %v493
    %518 = vmatprep.subr.mxu0 0.0
    %519 = vmatpush1.msra.mxu0 %v492
    %520 = vmatprep.subr.mxu0 0.0
    %521 = vmatpush1.msra.mxu0 %v491
    %522 = vmatprep.subr.mxu0 0.0
    %523 = vmatpush1.msra.mxu0 %v490
    %524 = vmatprep.subr.mxu0 0.0
    %525 = vmatpush1.msra.mxu0 %v489
    %526 = vmatprep.subr.mxu0 0.0
    %527 = vmatpush1.msra.mxu0 %v488
    %528 = vmatprep.subr.mxu0 0.0
    %529 = vmatpush1.msra.mxu0 %v487
    %530 = vmatprep.subr.mxu0 0.0
    %531 = vmatpush1.msra.mxu0 %v486
    %532 = vmatprep.subr.mxu0 0.0
    %533 = vmatpush2.msra.mxu0 0.0
    %534 = vmatprep.subr.mxu0 0.0
    %535 = vmatpush2.msra.mxu0 0.0
    %536 = vmatprep.subr.mxu0 0.0
    %537 = vmatpush2.msra.mxu0 0.0
    %538 = vmatprep.subr.mxu0 0.0
    %539 = vmatpush2.msra.mxu0 0.0
    %540 = vmatprep.subr.mxu0 0.0
    %541 = vmatpush2.msra.mxu0 0.0
    %542 = vmatprep.subr.mxu0 0.0
    %543 = vmatpush2.msra.mxu0 0.0
    %544 = vmatprep.subr.mxu0 0.0
    %545 = vmatpush2.msra.mxu0 0.0
    %546 = vmatprep.subr.mxu0 0.0
    %547 = vmatpush2.msra.mxu0 0.0
    %548 = vmatprep.subr.mxu0 0.0
    %549 = vmatpush2.msra.mxu0 0.0
    %550 = vmatprep.subr.mxu0 0.0
    %551 = vmatpush2.msra.mxu0 0.0
    %552 = vmatprep.subr.mxu0 0.0
    %553 = vmatpush2.msra.mxu0 0.0
    %554 = vmatprep.subr.mxu0 0.0
    %555 = vmatpush2.msra.mxu0 0.0
    %556 = vmatprep.subr.mxu0 0.0
    %557 = vmatpush2.msra.mxu0 0.0
    %558 = vmatprep.subr.mxu0 0.0
    %559 = vmatpush2.msra.mxu0 0.0
    %560 = vmatprep.subr.mxu0 0.0
    %561 = vmatpush2.msra.mxu0 0.0
    %562 = vmatprep.subr.mxu0 0.0
    %563 = vmatpush2.msra.mxu0 0.0
    %564 = vmatprep.mubr.f32.mxu0 0.0
    %565 = vmatmul.mubr.f32.gmra.mxu0 %v495
    %v566 = vpop.f32.mrf.mxu0
    %v567 = vadd.f32 0.0, %v566
    %v568 = vpop.f32.mrf.mxu0
    %569 = vmatprep.mubr.f32.mxu0 0.0
    %570 = vmatmul.mubr.f32.gmra.mxu0 %v498
    %v571 = vpop.f32.mrf.mxu0
    %v572 = vadd.f32 0.0, %v571
    %v573 = vpop.f32.mrf.mxu0
    %574 = vdwg.mxu0
    %v575 = vmax.f32 %v567, 1e-30
    %v576 = vmax.f32 %v572, 1e-30
    %579 = vrot.lane.b32.xlu0 %v575, 96
    %v580 = vpop.permute.xlu0 %579
    %581 = vrot.lane.b32.xlu0 %v576, 96
    %v582 = vpop.permute.xlu0 %581
    %v585 = vrcp.pop %v580
    %v586 = vmul.f32 %v567, %v585
    %v587 = vrcp.pop %v582
    %v588 = vmul.f32 %v572, %v587
    %v589 = vld [vmem:[#allocation2] sm:$0xff]
    %v590 = vld [vmem:[#allocation2 + $0x8] sm:$0xff]
    %v591 = vld [vmem:[#allocation2 + $0x10] sm:$0xff]
    %v592 = vld [vmem:[#allocation2 + $0x18] sm:$0xff]
    %v593 = vld [vmem:[%s6] sm:$0x1]
    %v595 = vlaneseq
    %v596 = vshrl.u32 %v595, 7
    %v597 = vsub.s32 0, %v596
    %v598 = vrot.slane %v593, %v597
    %v601 = vsel %vm96, %v586, 0
    %v604 = vsel %vm96, %v588, 0
    %606 = vmatprep.subr.mxu0 0.0
    %607 = vmatpush1.msra.mxu0 0.0
    %608 = vmatprep.subr.mxu0 0.0
    %609 = vmatpush1.msra.mxu0 0.0
    %610 = vmatprep.subr.mxu0 0.0
    %611 = vmatpush1.msra.mxu0 0.0
    %612 = vmatprep.subr.mxu0 0.0
    %613 = vmatpush1.msra.mxu0 0.0
    %614 = vmatprep.subr.mxu0 0.0
    %615 = vmatpush1.msra.mxu0 0.0
    %616 = vmatprep.subr.mxu0 0.0
    %617 = vmatpush1.msra.mxu0 0.0
    %618 = vmatprep.subr.mxu0 0.0
    %619 = vmatpush1.msra.mxu0 0.0
    %620 = vmatprep.subr.mxu0 0.0
    %621 = vmatpush1.msra.mxu0 0.0
    %622 = vmatprep.subr.mxu0 0.0
    %623 = vmatpush1.msra.mxu0 0.0
    %624 = vmatprep.subr.mxu0 0.0
    %625 = vmatpush1.msra.mxu0 0.0
    %626 = vmatprep.subr.mxu0 0.0
    %627 = vmatpush1.msra.mxu0 0.0
    %628 = vmatprep.subr.mxu0 0.0
    %629 = vmatpush1.msra.mxu0 0.0
    %630 = vmatprep.subr.mxu0 0.0
    %631 = vmatpush1.msra.mxu0 %v592
    %632 = vmatprep.subr.mxu0 0.0
    %633 = vmatpush1.msra.mxu0 %v591
    %634 = vmatprep.subr.mxu0 0.0
    %635 = vmatpush1.msra.mxu0 %v590
    %636 = vmatprep.subr.mxu0 0.0
    %637 = vmatpush1.msra.mxu0 %v589
    %638 = vmatprep.subr.mxu0 0.0
    %639 = vmatpush2.msra.mxu0 0.0
    %640 = vmatprep.subr.mxu0 0.0
    %641 = vmatpush2.msra.mxu0 0.0
    %642 = vmatprep.subr.mxu0 0.0
    %643 = vmatpush2.msra.mxu0 0.0
    %644 = vmatprep.subr.mxu0 0.0
    %645 = vmatpush2.msra.mxu0 0.0
    %646 = vmatprep.subr.mxu0 0.0
    %647 = vmatpush2.msra.mxu0 0.0
    %648 = vmatprep.subr.mxu0 0.0
    %649 = vmatpush2.msra.mxu0 0.0
    %650 = vmatprep.subr.mxu0 0.0
    %651 = vmatpush2.msra.mxu0 0.0
    %652 = vmatprep.subr.mxu0 0.0
    %653 = vmatpush2.msra.mxu0 0.0
    %654 = vmatprep.subr.mxu0 0.0
    %655 = vmatpush2.msra.mxu0 0.0
    %656 = vmatprep.subr.mxu0 0.0
    %657 = vmatpush2.msra.mxu0 0.0
    %658 = vmatprep.subr.mxu0 0.0
    %659 = vmatpush2.msra.mxu0 0.0
    %660 = vmatprep.subr.mxu0 0.0
    %661 = vmatpush2.msra.mxu0 0.0
    %662 = vmatprep.subr.mxu0 0.0
    %663 = vmatpush2.msra.mxu0 0.0
    %664 = vmatprep.subr.mxu0 0.0
    %665 = vmatpush2.msra.mxu0 0.0
    %666 = vmatprep.subr.mxu0 0.0
    %667 = vmatpush2.msra.mxu0 0.0
    %668 = vmatprep.subr.mxu0 0.0
    %669 = vmatpush2.msra.mxu0 0.0
    %670 = vmatprep.mubr.f32.mxu0 0.0
    %671 = vmatmul.mubr.f32.gmra.mxu0 %v601
    %v672 = vpop.f32.mrf.mxu0
    %v673 = vadd.f32 %v598, %v672
    %v674 = vpop.f32.mrf.mxu0
    %675 = vmatprep.mubr.f32.mxu0 0.0
    %676 = vmatmul.mubr.f32.gmra.mxu0 %v604
    %v677 = vpop.f32.mrf.mxu0
    %v678 = vadd.f32 %v598, %v677
    %v679 = vpop.f32.mrf.mxu0
    %680 = vdwg.mxu0
    %v681 = vadd.f32 %v673, %v92
    %v682 = vadd.f32 %v678, %v93
    %v683 = vld [vmem:[%s7] sm:$0x1]
    %v684 = vld [vmem:[%s8] sm:$0x1]
    %v685 = vsel %vm96, %v681, 0.0
    %686 = vadd.xlane.f32.xlu0 %v685
    %v687 = vpop.xlane.xlu0 %686
    %v688 = vsel %vm96, %v682, 0.0
    %689 = vadd.xlane.f32.xlu0 %v688
    %v690 = vpop.xlane.xlu0 %689
    %v691 = vmul.f32 %v687, %v103
    %v692 = vmul.f32 %v690, %v103
    %v693 = vmul.f32 %v681, %v681
    %v694 = vmul.f32 %v682, %v682
    %v695 = vsel %vm96, %v693, 0.0
    %696 = vadd.xlane.f32.xlu0 %v695
    %v697 = vpop.xlane.xlu0 %696
    %v698 = vsel %vm96, %v694, 0.0
    %699 = vadd.xlane.f32.xlu0 %v698
    %v700 = vpop.xlane.xlu0 %699
    %v701 = vmul.f32 %v697, %v103
    %v702 = vmul.f32 %v700, %v103
    %v703 = vmul.f32 %v691, %v691
    %v704 = vmul.f32 %v692, %v692
    %v705 = vsub.f32 %v701, %v703
    %v706 = vsub.f32 %v702, %v704
    %v707 = vmax.f32 %v705, 0.0
    %v708 = vmax.f32 %v706, 0.0
    %v709 = vsub.f32 %v681, %v691
    %v710 = vsub.f32 %v682, %v692
    %v711 = vadd.f32 %v707, 1e-06
    %v712 = vadd.f32 %v708, 1e-06
    %v713 = vrsqrt.pop %v711
    %v714 = vrsqrt.pop %v712
    %v715 = vmul.f32 %v709, %v713
    %v716 = vmul.f32 %v710, %v714
    %v718 = vlaneseq
    %v719 = vshrl.u32 %v718, 7
    %v720 = vsub.s32 0, %v719
    %v721 = vrot.slane %v683, %v720
    %v723 = vmul.f32 %v715, %v721
    %v724 = vmul.f32 %v716, %v721
    %v726 = vlaneseq
    %v727 = vshrl.u32 %v726, 7
    %v728 = vsub.s32 0, %v727
    %v729 = vrot.slane %v684, %v728
    %v731 = vadd.f32 %v723, %v729
    %v732 = vadd.f32 %v724, %v729
    %v733 = vld [vmem:[#allocation5] sm:$0xff]
    %v734 = vld [vmem:[#allocation5 + $0x8] sm:$0xff]
    %v735 = vld [vmem:[#allocation5 + $0x10] sm:$0xff]
    %v736 = vld [vmem:[#allocation5 + $0x18] sm:$0xff]
    %v737 = vld [vmem:[%s10] sm:$0x1]
    %v739 = vlaneseq
    %v740 = vshrl.u32 %v739, 7
    %v741 = vsub.s32 0, %v740
    %v742 = vrot.slane %v737, %v741
    %v745 = vsel %vm96, %v731, 0
    %v748 = vsel %vm96, %v732, 0
    %750 = vmatprep.subr.mxu0 0.0
    %751 = vmatpush1.msra.mxu0 0.0
    %752 = vmatprep.subr.mxu0 0.0
    %753 = vmatpush1.msra.mxu0 0.0
    %754 = vmatprep.subr.mxu0 0.0
    %755 = vmatpush1.msra.mxu0 0.0
    %756 = vmatprep.subr.mxu0 0.0
    %757 = vmatpush1.msra.mxu0 0.0
    %758 = vmatprep.subr.mxu0 0.0
    %759 = vmatpush1.msra.mxu0 0.0
    %760 = vmatprep.subr.mxu0 0.0
    %761 = vmatpush1.msra.mxu0 0.0
    %762 = vmatprep.subr.mxu0 0.0
    %763 = vmatpush1.msra.mxu0 0.0
    %764 = vmatprep.subr.mxu0 0.0
    %765 = vmatpush1.msra.mxu0 0.0
    %766 = vmatprep.subr.mxu0 0.0
    %767 = vmatpush1.msra.mxu0 0.0
    %768 = vmatprep.subr.mxu0 0.0
    %769 = vmatpush1.msra.mxu0 0.0
    %770 = vmatprep.subr.mxu0 0.0
    %771 = vmatpush1.msra.mxu0 0.0
    %772 = vmatprep.subr.mxu0 0.0
    %773 = vmatpush1.msra.mxu0 0.0
    %774 = vmatprep.subr.mxu0 0.0
    %775 = vmatpush1.msra.mxu0 %v736
    %776 = vmatprep.subr.mxu0 0.0
    %777 = vmatpush1.msra.mxu0 %v735
    %778 = vmatprep.subr.mxu0 0.0
    %779 = vmatpush1.msra.mxu0 %v734
    %780 = vmatprep.subr.mxu0 0.0
    %781 = vmatpush1.msra.mxu0 %v733
    %782 = vmatprep.subr.mxu0 0.0
    %783 = vmatpush2.msra.mxu0 0.0
    %784 = vmatprep.subr.mxu0 0.0
    %785 = vmatpush2.msra.mxu0 0.0
    %786 = vmatprep.subr.mxu0 0.0
    %787 = vmatpush2.msra.mxu0 0.0
    %788 = vmatprep.subr.mxu0 0.0
    %789 = vmatpush2.msra.mxu0 0.0
    %790 = vmatprep.subr.mxu0 0.0
    %791 = vmatpush2.msra.mxu0 0.0
    %792 = vmatprep.subr.mxu0 0.0
    %793 = vmatpush2.msra.mxu0 0.0
    %794 = vmatprep.subr.mxu0 0.0
    %795 = vmatpush2.msra.mxu0 0.0
    %796 = vmatprep.subr.mxu0 0.0
    %797 = vmatpush2.msra.mxu0 0.0
    %798 = vmatprep.subr.mxu0 0.0
    %799 = vmatpush2.msra.mxu0 0.0
    %800 = vmatprep.subr.mxu0 0.0
    %801 = vmatpush2.msra.mxu0 0.0
    %802 = vmatprep.subr.mxu0 0.0
    %803 = vmatpush2.msra.mxu0 0.0
    %804 = vmatprep.subr.mxu0 0.0
    %805 = vmatpush2.msra.mxu0 0.0
    %806 = vmatprep.subr.mxu0 0.0
    %807 = vmatpush2.msra.mxu0 0.0
    %808 = vmatprep.subr.mxu0 0.0
    %809 = vmatpush2.msra.mxu0 0.0
    %810 = vmatprep.subr.mxu0 0.0
    %811 = vmatpush2.msra.mxu0 0.0
    %812 = vmatprep.subr.mxu0 0.0
    %813 = vmatpush2.msra.mxu0 0.0
    %814 = vmatprep.mubr.f32.mxu0 0.0
    %815 = vmatmul.mubr.f32.gmra.mxu0 %v745
    %v816 = vpop.f32.mrf.mxu0
    %v817 = vadd.f32 %v742, %v816
    %v818 = vpop.f32.mrf.mxu0
    %819 = vmatprep.mubr.f32.mxu0 0.0
    %820 = vmatmul.mubr.f32.gmra.mxu0 %v748
    %v821 = vpop.f32.mrf.mxu0
    %v822 = vadd.f32 %v742, %v821
    %v823 = vpop.f32.mrf.mxu0
    %824 = vdwg.mxu0
    %v825 = vmul.f32 %v817, 0.5
    %v826 = vmul.f32 %v822, 0.5
    %v827 = vmul.f32 %v817, 0.70710677
    %v828 = vmul.f32 %v822, 0.70710677
    %v829 = verf.f32.pop %v827
    %v830 = verf.f32.pop %v828
    %v831 = vadd.f32 %v829, 1.0
    %v832 = vadd.f32 %v830, 1.0
    %v833 = vmul.f32 %v825, %v831
    %v834 = vmul.f32 %v826, %v832
    %v835 = vld [vmem:[%s11] sm:$0xff]
    %v836 = vld [vmem:[%s11 + $0x8] sm:$0xff]
    %v837 = vld [vmem:[%s11 + $0x10] sm:$0xff]
    %v838 = vld [vmem:[%s11 + $0x18] sm:$0xff]
    %v839 = vld [vmem:[%s11 + $0x20] sm:$0xff]
    %v840 = vld [vmem:[%s11 + $0x28] sm:$0xff]
    %v841 = vld [vmem:[%s11 + $0x30] sm:$0xff]
    %v842 = vld [vmem:[%s11 + $0x38] sm:$0xff]
    %v843 = vld [vmem:[%s12] sm:$0x1]
    %v845 = vlaneseq
    %v846 = vshrl.u32 %v845, 7
    %v847 = vsub.s32 0, %v846
    %v848 = vrot.slane %v843, %v847
    %v851 = vsel %vm441, %v833, 0
    %v854 = vsel %vm441, %v834, 0
    %856 = vmatprep.subr.mxu0 0.0
    %857 = vmatpush1.msra.mxu0 0.0
    %858 = vmatprep.subr.mxu0 0.0
    %859 = vmatpush1.msra.mxu0 0.0
    %860 = vmatprep.subr.mxu0 0.0
    %861 = vmatpush1.msra.mxu0 0.0
    %862 = vmatprep.subr.mxu0 0.0
    %863 = vmatpush1.msra.mxu0 0.0
    %864 = vmatprep.subr.mxu0 0.0
    %865 = vmatpush1.msra.mxu0 0.0
    %866 = vmatprep.subr.mxu0 0.0
    %867 = vmatpush1.msra.mxu0 0.0
    %868 = vmatprep.subr.mxu0 0.0
    %869 = vmatpush1.msra.mxu0 0.0
    %870 = vmatprep.subr.mxu0 0.0
    %871 = vmatpush1.msra.mxu0 0.0
    %872 = vmatprep.subr.mxu0 0.0
    %873 = vmatpush1.msra.mxu0 %v842
    %874 = vmatprep.subr.mxu0 0.0
    %875 = vmatpush1.msra.mxu0 %v841
    %876 = vmatprep.subr.mxu0 0.0
    %877 = vmatpush1.msra.mxu0 %v840
    %878 = vmatprep.subr.mxu0 0.0
    %879 = vmatpush1.msra.mxu0 %v839
    %880 = vmatprep.subr.mxu0 0.0
    %881 = vmatpush1.msra.mxu0 %v838
    %882 = vmatprep.subr.mxu0 0.0
    %883 = vmatpush1.msra.mxu0 %v837
    %884 = vmatprep.subr.mxu0 0.0
    %885 = vmatpush1.msra.mxu0 %v836
    %886 = vmatprep.subr.mxu0 0.0
    %887 = vmatpush1.msra.mxu0 %v835
    %888 = vmatprep.subr.mxu0 0.0
    %889 = vmatpush2.msra.mxu0 0.0
    %890 = vmatprep.subr.mxu0 0.0
    %891 = vmatpush2.msra.mxu0 0.0
    %892 = vmatprep.subr.mxu0 0.0
    %893 = vmatpush2.msra.mxu0 0.0
    %894 = vmatprep.subr.mxu0 0.0
    %895 = vmatpush2.msra.mxu0 0.0
    %896 = vmatprep.subr.mxu0 0.0
    %897 = vmatpush2.msra.mxu0 0.0
    %898 = vmatprep.subr.mxu0 0.0
    %899 = vmatpush2.msra.mxu0 0.0
    %900 = vmatprep.subr.mxu0 0.0
    %901 = vmatpush2.msra.mxu0 0.0
    %902 = vmatprep.subr.mxu0 0.0
    %903 = vmatpush2.msra.mxu0 0.0
    %904 = vmatprep.subr.mxu0 0.0
    %905 = vmatpush2.msra.mxu0 0.0
    %906 = vmatprep.subr.mxu0 0.0
    %907 = vmatpush2.msra.mxu0 0.0
    %908 = vmatprep.subr.mxu0 0.0
    %909 = vmatpush2.msra.mxu0 0.0
    %910 = vmatprep.subr.mxu0 0.0
    %911 = vmatpush2.msra.mxu0 0.0
    %912 = vmatprep.subr.mxu0 0.0
    %913 = vmatpush2.msra.mxu0 0.0
    %914 = vmatprep.subr.mxu0 0.0
    %915 = vmatpush2.msra.mxu0 0.0
    %916 = vmatprep.subr.mxu0 0.0
    %917 = vmatpush2.msra.mxu0 0.0
    %918 = vmatprep.subr.mxu0 0.0
    %919 = vmatpush2.msra.mxu0 0.0
    %920 = vmatprep.mubr.f32.mxu0 0.0
    %921 = vmatmul.mubr.f32.gmra.mxu0 %v851
    %v922 = vpop.f32.mrf.mxu0
    %v923 = vadd.f32 %v848, %v922
    %v924 = vpop.f32.mrf.mxu0
    %925 = vmatprep.mubr.f32.mxu0 0.0
    %926 = vmatmul.mubr.f32.gmra.mxu0 %v854
    %v927 = vpop.f32.mrf.mxu0
    %v928 = vadd.f32 %v848, %v927
    %v929 = vpop.f32.mrf.mxu0
    %930 = vdwg.mxu0
    %v931 = vadd.f32 %v923, %v681
    %v932 = vadd.f32 %v928, %v682
    %933 = vst.msk [vmem:[#allocation8] sm:$0xff] %vm96, %v931
    %934 = vst.msk [vmem:[#allocation8 + $0x8] sm:$0xff] %vm96, %v932
    // Predicated region
    $region74: #{block_forward.1} parent=1 // pred_check
      _
    $region75: #{block_forward.1} parent=1 // pred_check_branch
      %936 = sbr.rel (0) target = $region77
    $region76: #{block_forward.1} parent=1 // pred_region
      %s938 = ssub.s32 256, 256
      %939 = vsyncadd [#allocation4], %s938
      %s940 = sshll.u32 [#allocation8], 4
      %s941 = int_to_ptr.vmem [resolvable:$true] %s940
      %946 = dma.vmem_to_hbm [thread:$0]  %s941, 256, %s15, [#allocation4], 128, 128, 8
    $region77: #{block_forward.1} parent=1 // pred_fallthru
      _
    // Predicated region
    $region78: #{block_forward.1} parent=1 // pred_check
      _
    $region79: #{block_forward.1} parent=1 // pred_check_branch
      %948 = sbr.rel (0) target = $region81
    $region80: #{block_forward.1} parent=1 // pred_region
      %949 = dma.done [#allocation4], 256
    $region81: #{block_forward.1} parent=1 // pred_fallthru
      _
    %950 = vsyncpa [#allocation3], 1
    %951 = vsyncpa [#allocation6], 1
    %952 = vsyncpa [#allocation4], 1

</llo_original>
